<compile_context>
chip_gen: v7x
topology: tpu7x:2x2x1
jax: 0.10.0
libtpu: 0.0.40
codegen_flags: <defaults>
</compile_context>

<pallas_src>
import jax
import jax.numpy as jnp
from jax import lax
from jax.experimental import pallas as pl
from jax.experimental.pallas import tpu as pltpu


def _round_up(x: int, m: int) -> int:
    return ((x + m - 1) // m) * m


def _default_actor_tile() -> int:
    """Bigger actor tile on v5e/v6e (128 MiB VMEM), smaller on v7x (64 MiB)."""
    try:
        kind = jax.devices()[0].device_kind.lower()
    except Exception:
        return 256
    return 512 if ("v5" in kind or "v6" in kind) else 256


def _resident_spec(shape):
    """BlockSpec for an input identical at every grid step (constant index_map).

    Single-buffered when the installed Pallas supports pipeline_mode: double
    buffering a resident input only wastes VMEM."""
    index_map = lambda i: (0,) * len(shape)
    try:
        return pl.BlockSpec(shape, index_map, pipeline_mode=pl.Buffered(1))
    except Exception:  # older Pallas without pipeline_mode / Buffered
        return pl.BlockSpec(shape, index_map)


def _bill_keys_kernel(bill_ref, wk_ref, knorm_ref):
    # k = bill_tile @ W_k.T  (bf16 operands, f32 accumulation; no transpose)
    k = lax.dot_general(bill_ref[...], wk_ref[...],
                        dimension_numbers=(((1,), (1,)), ((), ())),
                        preferred_element_type=jnp.float32)
    ssq = jnp.sum(k * k, axis=-1, keepdims=True)
    # F.normalize: v / max(||v||, 1e-12) == v * rsqrt(max(||v||^2, 1e-24))
    knorm_ref[...] = (k * lax.rsqrt(jnp.maximum(ssq, 1e-24))).astype(knorm_ref.dtype)


def _make_aligner_kernel(num_bills: int, num_bills_padded: int, has_mask: bool):
    mask_padded_cols = num_bills < num_bills_padded

    def compute(actor_ref, knorm_ref, topic_ref, wq_ref, out_ref, mask_ref=None):
        # q = actor_tile @ W_q.T  (bf16 operands, f32 accumulation)
        q = lax.dot_general(actor_ref[...], wq_ref[...],
                            dimension_numbers=(((1,), (1,)), ((), ())),
                            preferred_element_type=jnp.float32)
        ssq = jnp.sum(q * q, axis=-1, keepdims=True)
        q_norm = q * lax.rsqrt(jnp.maximum(ssq, 1e-24))

        # cosine logits vs resident normalized keys: [TA, B_pad]
        logits = lax.dot_general(q_norm.astype(knorm_ref.dtype), knorm_ref[...],
                                 dimension_numbers=(((1,), (1,)), ((), ())),
                                 preferred_element_type=jnp.float32)

        if has_mask:
            # masked_fill(~reach_mask, -1e9)
            logits = jnp.where(mask_ref[...] != 0, logits, -1e9)
        if mask_padded_cols:
            # Padded bill columns -> -inf so they contribute exactly 0 to the
            # softmax (fully-masked rows stay uniform over the *real* bills,
            # matching torch).
            col = lax.broadcasted_iota(jnp.int32, logits.shape, 1)
            logits = jnp.where(col < num_bills, logits, -jnp.inf)

        # softmax over the bill axis.  After max-subtraction the denominator
        # is >= 1, so alpha is always finite (torch's nan_to_num is a no-op).
        m = jnp.max(logits, axis=1, keepdims=True)
        e = jnp.exp(logits - m)
        alpha = e / jnp.sum(e, axis=1, keepdims=True)

        # alpha @ bill_topic_prob : [TA, T_pad]  (bf16 operands, f32 accum)
        out_ref[...] = jnp.dot(alpha.astype(topic_ref.dtype), topic_ref[...],
                               preferred_element_type=jnp.float32
                               ).astype(out_ref.dtype)

    if has_mask:
        def kernel(actor_ref, knorm_ref, topic_ref, wq_ref, mask_ref, out_ref):
            compute(actor_ref, knorm_ref, topic_ref, wq_ref, out_ref, mask_ref)
    else:
        def kernel(actor_ref, knorm_ref, topic_ref, wq_ref, out_ref):
            compute(actor_ref, knorm_ref, topic_ref, wq_ref, out_ref)
    return kernel


def actor_topic_aligner(actor_z, bill_z, bill_topic_prob, w_q, w_k,
                        reach_mask=None):
    """JAX/Pallas equivalent of ActorTopicAligner.forward."""
    A, D = actor_z.shape
    B, _ = bill_z.shape
    _, T = bill_topic_prob.shape
    f32, bf16 = jnp.float32, jnp.bfloat16

    # Lane-dense padding: every last dim -> multiple of 128.
    D_pad = _round_up(D, 128)
    T_pad = _round_up(T, 128)
    B_pad = _round_up(B, 128)
    TA = min(_default_actor_tile(), _round_up(A, 8))
    A_pad = _round_up(A, TA)
    n_a = A_pad // TA

    # bf16 MXU operands (accumulation stays f32 inside the kernels).
    actor_p = jnp.zeros((A_pad, D_pad), bf16).at[:A, :D].set(actor_z.astype(bf16))
    bill_p = jnp.zeros((B_pad, D_pad), bf16).at[:B, :D].set(bill_z.astype(bf16))
    topic_p = jnp.zeros((B_pad, T_pad), bf16).at[:B, :T].set(
        bill_topic_prob.astype(bf16))
    wq_p = jnp.zeros((D_pad, D_pad), bf16).at[:D, :D].set(w_q.astype(bf16))
    wk_p = jnp.zeros((D_pad, D_pad), bf16).at[:D, :D].set(w_k.astype(bf16))

    # ---- Step 1: bill-side keys (computed once, tiled over bill rows) ----
    TB = next(c for c in (512, 256, 128) if B_pad % c == 0)
    n_b = B_pad // TB
    keys_need = (2 * (2 * TB * D_pad)       # bill tile, double-buffered, bf16
                 + 2 * D_pad * D_pad        # W_k resident, bf16
                 + 2 * (2 * TB * D_pad))    # output tile, double-buffered, bf16
    keys_vmem_limit = int(min(56 * 2**20, max(16 * 2**20, 2 * keys_need)))

    k_norm = pl.pallas_call(
        _bill_keys_kernel,
        out_shape=jax.ShapeDtypeStruct((B_pad, D_pad), bf16),
        grid=(n_b,),
        in_specs=[pl.BlockSpec((TB, D_pad), lambda i: (i, 0)),
                  _resident_spec((D_pad, D_pad))],
        out_specs=pl.BlockSpec((TB, D_pad), lambda i: (i, 0)),
        compiler_params=pltpu.CompilerParams(
            dimension_semantics=("parallel",),
            vmem_limit_bytes=keys_vmem_limit),
    )(bill_p, wk_p)

    # ---- Step 2: actor-tiled attention + topic aggregation ----
    has_mask = reach_mask is not None
    in_specs = [
        pl.BlockSpec((TA, D_pad), lambda i: (i, 0)),   # actor tile (streamed)
        _resident_spec((B_pad, D_pad)),                # normalized keys
        _resident_spec((B_pad, T_pad)),                # topic table
        _resident_spec((D_pad, D_pad)),                # W_q
    ]
    args = [actor_p, k_norm, topic_p, wq_p]
    if has_mask:
        # PyTorch-style size-trimming, then int8 (4x less DMA than int32).
        core = reach_mask[:A, :B].astype(jnp.int8)
        mask_p = jnp.zeros((A_pad, B_pad), jnp.int8).at[:A, :B].set(core)
        in_specs.append(pl.BlockSpec((TA, B_pad), lambda i: (i, 0)))
        args.append(mask_p)

    resident_bytes = 2 * (B_pad * D_pad + B_pad * T_pad + D_pad * D_pad)
    streamed_bytes = 2 * (2 * TA * D_pad) + 2 * (4 * TA * T_pad)
    if has_mask:
        streamed_bytes += 2 * (TA * B_pad)
    scratch_bytes = 4 * TA * (B_pad + 2 * D_pad)       # f32 logits / q temps
    vmem_limit = int(min(56 * 2**20,
                         max(24 * 2**20,
                             2 * (resident_bytes + streamed_bytes + scratch_bytes))))

    flops = (2 * A_pad * D_pad * D_pad        # q projection
             + 2 * A_pad * B_pad * D_pad      # cosine logits
             + 2 * A_pad * B_pad * T_pad)     # topic aggregation
    bytes_accessed = (2 * (A_pad * D_pad + B_pad * D_pad + B_pad * T_pad
                           + D_pad * D_pad)
                      + 4 * A_pad * T_pad
                      + (A_pad * B_pad if has_mask else 0))
    cost = pl.CostEstimate(flops=int(flops),
                           transcendentals=int(A_pad * B_pad + A_pad),
                           bytes_accessed=int(bytes_accessed))

    out_p = pl.pallas_call(
        _make_aligner_kernel(B, B_pad, has_mask),
        out_shape=jax.ShapeDtypeStruct((A_pad, T_pad), f32),
        grid=(n_a,),
        in_specs=in_specs,
        out_specs=pl.BlockSpec((TA, T_pad), lambda i: (i, 0)),
        compiler_params=pltpu.CompilerParams(
            dimension_semantics=("parallel",),
            vmem_limit_bytes=vmem_limit),
        cost_estimate=cost,
    )(*args)

    return out_p[:A, :T]


if __name__ == "__main__":
    key = jax.random.PRNGKey(0)
    k_actor, k_bill, k_topic, k_wq, k_wk, k_mask = jax.random.split(key, 6)

    A, B, D, T = 8, 16, 32, 8

    actor_z = jax.random.normal(k_actor, (A, D), dtype=jnp.float32)
    bill_z = jax.random.normal(k_bill, (B, D), dtype=jnp.float32)
    bill_topic_prob = jax.nn.softmax(
        jax.random.normal(k_topic, (B, T), dtype=jnp.float32), axis=-1)

    # Deterministic nn.Linear-style weights (uniform in +/- 1/sqrt(D)).
    bound = 1.0 / (D ** 0.5)
    w_q = jax.random.uniform(k_wq, (D, D), minval=-bound, maxval=bound,
                             dtype=jnp.float32)
    w_k = jax.random.uniform(k_wk, (D, D), minval=-bound, maxval=bound,
                             dtype=jnp.float32)
    reach_mask = jax.random.bernoulli(k_mask, p=0.7, shape=(A, B))

    # Pure-JAX reference (f32).
    def ref(actor_z, bill_z, P, wq, wk, mask):
        q = actor_z @ wq.T
        k = bill_z @ wk.T
        qn = q / jnp.maximum(jnp.linalg.norm(q, axis=-1, keepdims=True), 1e-12)
        kn = k / jnp.maximum(jnp.linalg.norm(k, axis=-1, keepdims=True), 1e-12)
        logits = qn @ kn.T
        if mask is not None:
            logits = jnp.where(mask, logits, -1e9)
        alpha = jax.nn.softmax(logits, axis=1)
        return alpha @ P

    # Masked path.
    out = actor_topic_aligner(actor_z, bill_z, bill_topic_prob, w_q, w_k,
                              reach_mask)
    jax.block_until_ready(out)
    expected = ref(actor_z, bill_z, bill_topic_prob, w_q, w_k, reach_mask)
    assert jnp.allclose(out, expected, atol=3e-3, rtol=3e-3), (
        float(jnp.max(jnp.abs(out - expected))))

    # Unmasked path (no mask array materialized or streamed).
    out_nm = actor_topic_aligner(actor_z, bill_z, bill_topic_prob, w_q, w_k,
                                 None)
    jax.block_until_ready(out_nm)
    expected_nm = ref(actor_z, bill_z, bill_topic_prob, w_q, w_k, None)
    assert jnp.allclose(out_nm, expected_nm, atol=3e-3, rtol=3e-3), (
        float(jnp.max(jnp.abs(out_nm - expected_nm))))

    print("KERNEL_OK")
</pallas_src>

<mosaic_0001>
module attributes {stable_mosaic.version = 11 : i64} {
  func.func @_bill_keys_kernel(%arg0: i32, %arg1: memref<128x128xbf16, #tpu.memory_space<vmem>>, %arg2: memref<128x128xbf16, #tpu.memory_space<vmem>>, %arg3: memref<128x128xbf16, #tpu.memory_space<vmem>>) attributes {dimension_semantics = [#tpu.dimension_semantics<parallel>], iteration_bounds = array<i64: 1>, scalar_prefetch = 0 : i64, scratch_operands = 0 : i64, tpu.core_type = #tpu.core_type<tc>, window_params = [{transform_indices = @transform_0, window_bounds = array<i64: 128, 128>}, {pipeline_mode = #tpu.pipeline_mode<synchronous>, transform_indices = @transform_1, window_bounds = array<i64: 128, 128>}, {transform_indices = @transform_2, window_bounds = array<i64: 128, 128>}]} {
    %c0 = arith.constant 0 : index
    %c0_0 = arith.constant 0 : index
    %0 = vector.load %arg1[%c0, %c0_0] : memref<128x128xbf16, #tpu.memory_space<vmem>>, vector<128x128xbf16>
    %c0_1 = arith.constant 0 : index
    %c0_2 = arith.constant 0 : index
    %1 = vector.load %arg2[%c0_1, %c0_2] : memref<128x128xbf16, #tpu.memory_space<vmem>>, vector<128x128xbf16>
    %cst = arith.constant dense<0.000000e+00> : vector<128x128xf32>
    %2 = tpu.matmul %0, %1, %cst {dimension_numbers = #tpu.dot_dimension_numbers<[1], [1], [0], [0], [0, 0, 1, 0], [], []>} : vector<128x128xbf16>, vector<128x128xbf16>, vector<128x128xf32> -> vector<128x128xf32>
    %3 = arith.mulf %2, %2 : vector<128x128xf32>
    %cst_3 = arith.constant dense<0.000000e+00> : vector<128xf32>
    %4 = vector.multi_reduction <add>, %3, %cst_3 [1] : vector<128x128xf32> to vector<128xf32>
    %5 = vector.shape_cast %4 : vector<128xf32> to vector<128x1xf32>
    %cst_4 = arith.constant 1.000000e-24 : f32
    %6 = vector.broadcast %cst_4 : f32 to vector<128x1xf32>
    %7 = arith.maximumf %5, %6 : vector<128x1xf32>
    %8 = math.rsqrt %7 : vector<128x1xf32>
    %9 = vector.broadcast %8 : vector<128x1xf32> to vector<128x128xf32>
    %10 = arith.mulf %2, %9 : vector<128x128xf32>
    %11 = arith.truncf %10 : vector<128x128xf32> to vector<128x128xbf16>
    %c0_5 = arith.constant 0 : index
    %c0_6 = arith.constant 0 : index
    %12 = vector.load %arg3[%c0_5, %c0_6] : memref<128x128xbf16, #tpu.memory_space<vmem>>, vector<128x128xbf16>
    tpu.vector_store %arg3[%c0_5, %c0_6], %11 {strides = array<i32>} : memref<128x128xbf16, #tpu.memory_space<vmem>>, vector<128x128xbf16>,
    return
  }
  func.func @transform_0(%arg0: i32) -> (i32, i32) {
    %c0_i32 = arith.constant 0 : i32
    %c0_i32_0 = arith.constant 0 : i32
    return %arg0, %c0_i32 : i32, i32
  }
  func.func @transform_1(%arg0: i32) -> (i32, i32) {
    %c0_i32 = arith.constant 0 : i32
    %c0_i32_0 = arith.constant 0 : i32
    %c0_i32_1 = arith.constant 0 : i32
    return %c0_i32, %c0_i32_0 : i32, i32
  }
  func.func @transform_2(%arg0: i32) -> (i32, i32) {
    %c0_i32 = arith.constant 0 : i32
    %c0_i32_0 = arith.constant 0 : i32
    return %arg0, %c0_i32 : i32, i32
  }
}

</mosaic_0001>

<llo_original>
// kernel: tpu_custom_call.1
$region0: #{tpu_custom_call.1}
  #allocation0 [shape = 'u32[]', space=smem, size = 0x4, offset = 0x4, fixed_abs, tag = 'smem constant byte address 0x4 - core index']
  #allocation1 [shape = 'u32[144,128]{1,0:T(1,128)}', space=vmem, size = 0x12000, scoped, tag = 'internal scratch']
  %s0 = inlined_call_operand.hbm [shape: bf16[128,128], index: 0, kind: input, shape index: {}]
  %s1 = inlined_call_operand.hbm [shape: bf16[128,128], index: 1, kind: input, shape index: {}]
  %s2 = inlined_call_operand.hbm [shape: bf16[128,128], index: 2, kind: output, shape index: {}]
  %s3 = sld [smem:[#allocation0]]
  $region26: #{tpu_custom_call.1} parent=0
    _
  %s5 = ssub.s32 1, %s3
  %s6 = scalar_select 0, %s5, %s3
  $region1: #{tpu_custom_call.1} parent=0
    #allocation2 [shape = 'u8[32768]{0}', space=vmem, size = 0x8000, scoped, tag = 'input window, operand 0, single buffered']
    #allocation3 [shape = 's32[1]{0}', space=sflag, size = 0x4, scoped, tag = 'scoped memory for tpu_custom_call.1']
    #allocation4 [shape = 's32[1]{0}', space=sflag, size = 0x4, scoped, tag = 'scoped memory for tpu_custom_call.1']
    #allocation5 [shape = 'u8[32768]{0}', space=vmem, size = 0x8000, scoped, tag = 'input window, operand 1, single buffered']
    #allocation6 [shape = 's32[1]{0}', space=sflag, size = 0x4, scoped, tag = 'scoped memory for tpu_custom_call.1']
    #allocation7 [shape = 'u8[32768]{0}', space=vmem, size = 0x8000, scoped, tag = 'output window, operand 0, single buffered']
    %7 = vsyncpa [#allocation3], 0
    %8 = vsyncpa [#allocation6], 0
    %9 = vsyncpa [#allocation4], 0
    // Predicated region
    $region2: #{tpu_custom_call.1} parent=1 // pred_check
      _
    $region3: #{tpu_custom_call.1} parent=1 // pred_check_branch
      %11 = sbr.rel (0) target = $region5
    $region4: #{tpu_custom_call.1} parent=1 // pred_region
      %s13 = ssub.s32 1024, 1024
      %14 = vsyncadd [#allocation3], %s13
      %s15 = sshll.u32 [#allocation2], 4
      %s16 = int_to_ptr.vmem [resolvable:$true] %s15
      %21 = dma.hbm_to_vmem [thread:$0]  %s0, 1024, %s16, [#allocation3], 64, 64, 4
    $region5: #{tpu_custom_call.1} parent=1 // pred_fallthru
      _
    // Predicated region
    $region6: #{tpu_custom_call.1} parent=1 // pred_check
      _
    $region7: #{tpu_custom_call.1} parent=1 // pred_check_branch
      %23 = sbr.rel (0) target = $region9
    $region8: #{tpu_custom_call.1} parent=1 // pred_region
      %s25 = ssub.s32 1024, 1024
      %26 = vsyncadd [#allocation6], %s25
      %s27 = sshll.u32 [#allocation5], 4
      %s28 = int_to_ptr.vmem [resolvable:$true] %s27
      %33 = dma.hbm_to_vmem [thread:$0]  %s1, 1024, %s28, [#allocation6], 64, 64, 4
    $region9: #{tpu_custom_call.1} parent=1 // pred_fallthru
      _
    // Predicated region
    $region10: #{tpu_custom_call.1} parent=1 // pred_check
      _
    $region11: #{tpu_custom_call.1} parent=1 // pred_check_branch
      %35 = sbr.rel (0) target = $region13
    $region12: #{tpu_custom_call.1} parent=1 // pred_region
      %36 = dma.done [#allocation3], 1024
    $region13: #{tpu_custom_call.1} parent=1 // pred_fallthru
      _
    // Predicated region
    $region14: #{tpu_custom_call.1} parent=1 // pred_check
      _
    $region15: #{tpu_custom_call.1} parent=1 // pred_check_branch
      %38 = sbr.rel (0) target = $region17
    $region16: #{tpu_custom_call.1} parent=1 // pred_region
      %39 = dma.done [#allocation6], 1024
    $region17: #{tpu_custom_call.1} parent=1 // pred_fallthru
      _
    %v41 = vld [vmem:[#allocation2] sm:$0xf]
    %v42 = vld [vmem:[#allocation2 + $0x4] sm:$0xf]
    %v43 = vld [vmem:[#allocation2 + $0x8] sm:$0xf]
    %v44 = vld [vmem:[#allocation2 + $0xc] sm:$0xf]
    %v45 = vld [vmem:[#allocation2 + $0x10] sm:$0xf]
    %v46 = vld [vmem:[#allocation2 + $0x14] sm:$0xf]
    %v47 = vld [vmem:[#allocation2 + $0x18] sm:$0xf]
    %v48 = vld [vmem:[#allocation2 + $0x1c] sm:$0xf]
    %v49 = vld [vmem:[#allocation2 + $0x20] sm:$0xf]
    %v50 = vld [vmem:[#allocation2 + $0x24] sm:$0xf]
    %v51 = vld [vmem:[#allocation2 + $0x28] sm:$0xf]
    %v52 = vld [vmem:[#allocation2 + $0x2c] sm:$0xf]
    %v53 = vld [vmem:[#allocation2 + $0x30] sm:$0xf]
    %v54 = vld [vmem:[#allocation2 + $0x34] sm:$0xf]
    %v55 = vld [vmem:[#allocation2 + $0x38] sm:$0xf]
    %v56 = vld [vmem:[#allocation2 + $0x3c] sm:$0xf]
    %v57 = vld [vmem:[#allocation5] sm:$0xf]
    %v58 = vld [vmem:[#allocation5 + $0x4] sm:$0xf]
    %v59 = vld [vmem:[#allocation5 + $0x8] sm:$0xf]
    %v60 = vld [vmem:[#allocation5 + $0xc] sm:$0xf]
    %v61 = vld [vmem:[#allocation5 + $0x10] sm:$0xf]
    %v62 = vld [vmem:[#allocation5 + $0x14] sm:$0xf]
    %v63 = vld [vmem:[#allocation5 + $0x18] sm:$0xf]
    %v64 = vld [vmem:[#allocation5 + $0x1c] sm:$0xf]
    %v65 = vld [vmem:[#allocation5 + $0x20] sm:$0xf]
    %v66 = vld [vmem:[#allocation5 + $0x24] sm:$0xf]
    %v67 = vld [vmem:[#allocation5 + $0x28] sm:$0xf]
    %v68 = vld [vmem:[#allocation5 + $0x2c] sm:$0xf]
    %v69 = vld [vmem:[#allocation5 + $0x30] sm:$0xf]
    %v70 = vld [vmem:[#allocation5 + $0x34] sm:$0xf]
    %v71 = vld [vmem:[#allocation5 + $0x38] sm:$0xf]
    %v72 = vld [vmem:[#allocation5 + $0x3c] sm:$0xf]
    %v89 = vunpack.c.l.b16 %v41
    %v90 = vunpack.c.l.b16 %v42
    %v91 = vunpack.c.l.b16 %v43
    %v92 = vunpack.c.l.b16 %v44
    %v93 = vunpack.c.l.b16 %v45
    %v94 = vunpack.c.l.b16 %v46
    %v95 = vunpack.c.l.b16 %v47
    %v96 = vunpack.c.l.b16 %v48
    %v97 = vunpack.c.l.b16 %v49
    %v98 = vunpack.c.l.b16 %v50
    %v99 = vunpack.c.l.b16 %v51
    %v100 = vunpack.c.l.b16 %v52
    %v101 = vunpack.c.l.b16 %v53
    %v102 = vunpack.c.l.b16 %v54
    %v103 = vunpack.c.l.b16 %v55
    %v104 = vunpack.c.l.b16 %v56
    %v105 = vpack.c.b16 %v90, %v89
    %v106 = vpack.c.b16 %v92, %v91
    %v107 = vpack.c.b16 %v94, %v93
    %v108 = vpack.c.b16 %v96, %v95
    %v109 = vpack.c.b16 %v98, %v97
    %v110 = vpack.c.b16 %v100, %v99
    %v111 = vpack.c.b16 %v102, %v101
    %v112 = vpack.c.b16 %v104, %v103
    %v137 = vunpack.c.l.b16 %v57
    %v138 = vunpack.c.l.b16 %v58
    %v139 = vunpack.c.l.b16 %v59
    %v140 = vunpack.c.l.b16 %v60
    %v141 = vunpack.c.l.b16 %v61
    %v142 = vunpack.c.l.b16 %v62
    %v143 = vunpack.c.l.b16 %v63
    %v144 = vunpack.c.l.b16 %v64
    %v145 = vunpack.c.l.b16 %v65
    %v146 = vunpack.c.l.b16 %v66
    %v147 = vunpack.c.l.b16 %v67
    %v148 = vunpack.c.l.b16 %v68
    %v149 = vunpack.c.l.b16 %v69
    %v150 = vunpack.c.l.b16 %v70
    %v151 = vunpack.c.l.b16 %v71
    %v152 = vunpack.c.l.b16 %v72
    %v153 = vpack.c.b16 %v138, %v137
    %v154 = vpack.c.b16 %v140, %v139
    %v155 = vpack.c.b16 %v142, %v141
    %v156 = vpack.c.b16 %v144, %v143
    %v157 = vpack.c.b16 %v146, %v145
    %v158 = vpack.c.b16 %v148, %v147
    %v159 = vpack.c.b16 %v150, %v149
    %v160 = vpack.c.b16 %v152, %v151
    %169 = vmatprep.subr.bf16.mxu0 0
    %170 = vmatpush1.bf16.xpose.msra.mxu0 %v153
    %171 = vmatprep.subr.bf16.mxu0 0
    %172 = vmatpush1.bf16.xpose.msra.mxu0 %v154
    %173 = vmatprep.subr.bf16.mxu0 0
    %174 = vmatpush1.bf16.xpose.msra.mxu0 %v155
    %175 = vmatprep.subr.bf16.mxu0 0
    %176 = vmatpush1.bf16.xpose.msra.mxu0 %v156
    %177 = vmatprep.subr.bf16.mxu0 0
    %178 = vmatpush1.bf16.xpose.msra.mxu0 %v157
    %179 = vmatprep.subr.bf16.mxu0 0
    %180 = vmatpush1.bf16.xpose.msra.mxu0 %v158
    %181 = vmatprep.subr.bf16.mxu0 0
    %182 = vmatpush1.bf16.xpose.msra.mxu0 %v159
    %183 = vmatprep.subr.bf16.mxu0 0
    %184 = vmatpush1.bf16.xpose.msra.mxu0 %v160
    %185 = vmatprep.subr.bf16.mxu0 0
    %186 = vmatpush1.bf16.xpose.msra.mxu0 0
    %187 = vmatprep.subr.bf16.mxu0 0
    %188 = vmatpush1.bf16.xpose.msra.mxu0 0
    %189 = vmatprep.subr.bf16.mxu0 0
    %190 = vmatpush1.bf16.xpose.msra.mxu0 0
    %191 = vmatprep.subr.bf16.mxu0 0
    %192 = vmatpush1.bf16.xpose.msra.mxu0 0
    %193 = vmatprep.subr.bf16.mxu0 0
    %194 = vmatpush1.bf16.xpose.msra.mxu0 0
    %195 = vmatprep.subr.bf16.mxu0 0
    %196 = vmatpush1.bf16.xpose.msra.mxu0 0
    %197 = vmatprep.subr.bf16.mxu0 0
    %198 = vmatpush1.bf16.xpose.msra.mxu0 0
    %199 = vmatprep.subr.bf16.mxu0 0
    %200 = vmatpush1.bf16.xpose.msra.mxu0 0
    %201 = vmatprep.mubr.bf16.mxu0 0
    %202 = vmatmul.mubr.bf16.gmra.mrb[0].mxu0 %v105
    %v203 = vpop.f32.mrb[0].mxu0
    %v204 = vadd.f32 0.0, %v203
    %v205 = vpop.f32.mrb[0].mxu0
    %v206 = vpop.f32.mrb[0].mxu0
    %v207 = vadd.f32 0.0, %v206
    %v208 = vpop.f32.mrb[0].mxu0
    %209 = vmatprep.mubr.bf16.mxu0 0
    %210 = vmatmul.mubr.bf16.gmra.mrb[0].mxu0 %v106
    %v211 = vpop.f32.mrb[0].mxu0
    %v212 = vadd.f32 0.0, %v211
    %v213 = vpop.f32.mrb[0].mxu0
    %v214 = vpop.f32.mrb[0].mxu0
    %v215 = vadd.f32 0.0, %v214
    %v216 = vpop.f32.mrb[0].mxu0
    %217 = vmatprep.mubr.bf16.mxu0 0
    %218 = vmatmul.mubr.bf16.gmra.mrb[0].mxu0 %v107
    %v219 = vpop.f32.mrb[0].mxu0
    %v220 = vadd.f32 0.0, %v219
    %v221 = vpop.f32.mrb[0].mxu0
    %v222 = vpop.f32.mrb[0].mxu0
    %v223 = vadd.f32 0.0, %v222
    %v224 = vpop.f32.mrb[0].mxu0
    %225 = vmatprep.mubr.bf16.mxu0 0
    %226 = vmatmul.mubr.bf16.gmra.mrb[0].mxu0 %v108
    %v227 = vpop.f32.mrb[0].mxu0
    %v228 = vadd.f32 0.0, %v227
    %v229 = vpop.f32.mrb[0].mxu0
    %v230 = vpop.f32.mrb[0].mxu0
    %v231 = vadd.f32 0.0, %v230
    %v232 = vpop.f32.mrb[0].mxu0
    %233 = vmatprep.mubr.bf16.mxu0 0
    %234 = vmatmul.mubr.bf16.gmra.mrb[0].mxu0 %v109
    %v235 = vpop.f32.mrb[0].mxu0
    %v236 = vadd.f32 0.0, %v235
    %v237 = vpop.f32.mrb[0].mxu0
    %v238 = vpop.f32.mrb[0].mxu0
    %v239 = vadd.f32 0.0, %v238
    %v240 = vpop.f32.mrb[0].mxu0
    %241 = vmatprep.mubr.bf16.mxu0 0
    %242 = vmatmul.mubr.bf16.gmra.mrb[0].mxu0 %v110
    %v243 = vpop.f32.mrb[0].mxu0
    %v244 = vadd.f32 0.0, %v243
    %v245 = vpop.f32.mrb[0].mxu0
    %v246 = vpop.f32.mrb[0].mxu0
    %v247 = vadd.f32 0.0, %v246
    %v248 = vpop.f32.mrb[0].mxu0
    %249 = vmatprep.mubr.bf16.mxu0 0
    %250 = vmatmul.mubr.bf16.gmra.mrb[0].mxu0 %v111
    %v251 = vpop.f32.mrb[0].mxu0
    %v252 = vadd.f32 0.0, %v251
    %v253 = vpop.f32.mrb[0].mxu0
    %v254 = vpop.f32.mrb[0].mxu0
    %v255 = vadd.f32 0.0, %v254
    %v256 = vpop.f32.mrb[0].mxu0
    %257 = vmatprep.mubr.bf16.mxu0 0
    %258 = vmatmul.mubr.bf16.gmra.mrb[0].mxu0 %v112
    %v259 = vpop.f32.mrb[0].mxu0
    %v260 = vadd.f32 0.0, %v259
    %v261 = vpop.f32.mrb[0].mxu0
    %v262 = vpop.f32.mrb[0].mxu0
    %v263 = vadd.f32 0.0, %v262
    %v264 = vpop.f32.mrb[0].mxu0
    %265 = vdwg.mxu0
    %v266 = vmul.f32 %v204, %v204
    %v267 = vmul.f32 %v207, %v207
    %v268 = vmul.f32 %v212, %v212
    %v269 = vmul.f32 %v215, %v215
    %v270 = vmul.f32 %v220, %v220
    %v271 = vmul.f32 %v223, %v223
    %v272 = vmul.f32 %v228, %v228
    %v273 = vmul.f32 %v231, %v231
    %v274 = vmul.f32 %v236, %v236
    %v275 = vmul.f32 %v239, %v239
    %v276 = vmul.f32 %v244, %v244
    %v277 = vmul.f32 %v247, %v247
    %v278 = vmul.f32 %v252, %v252
    %v279 = vmul.f32 %v255, %v255
    %v280 = vmul.f32 %v260, %v260
    %v281 = vmul.f32 %v263, %v263
    %282 = vadd.xlane.f32.xlu0 %v266
    %v283 = vpop.xlane.xlu0 %282
    %284 = vadd.xlane.f32.xlu0 %v267
    %v285 = vpop.xlane.xlu0 %284
    %286 = vadd.xlane.f32.xlu0 %v268
    %v287 = vpop.xlane.xlu0 %286
    %288 = vadd.xlane.f32.xlu0 %v269
    %v289 = vpop.xlane.xlu0 %288
    %290 = vadd.xlane.f32.xlu0 %v270
    %v291 = vpop.xlane.xlu0 %290
    %292 = vadd.xlane.f32.xlu0 %v271
    %v293 = vpop.xlane.xlu0 %292
    %294 = vadd.xlane.f32.xlu0 %v272
    %v295 = vpop.xlane.xlu0 %294
    %296 = vadd.xlane.f32.xlu0 %v273
    %v297 = vpop.xlane.xlu0 %296
    %298 = vadd.xlane.f32.xlu0 %v274
    %v299 = vpop.xlane.xlu0 %298
    %300 = vadd.xlane.f32.xlu0 %v275
    %v301 = vpop.xlane.xlu0 %300
    %302 = vadd.xlane.f32.xlu0 %v276
    %v303 = vpop.xlane.xlu0 %302
    %304 = vadd.xlane.f32.xlu0 %v277
    %v305 = vpop.xlane.xlu0 %304
    %306 = vadd.xlane.f32.xlu0 %v278
    %v307 = vpop.xlane.xlu0 %306
    %308 = vadd.xlane.f32.xlu0 %v279
    %v309 = vpop.xlane.xlu0 %308
    %310 = vadd.xlane.f32.xlu0 %v280
    %v311 = vpop.xlane.xlu0 %310
    %312 = vadd.xlane.f32.xlu0 %v281
    %v313 = vpop.xlane.xlu0 %312
    %v314 = vmax.f32 %v283, 1e-24
    %v315 = vmax.f32 %v285, 1e-24
    %v316 = vmax.f32 %v287, 1e-24
    %v317 = vmax.f32 %v289, 1e-24
    %v318 = vmax.f32 %v291, 1e-24
    %v319 = vmax.f32 %v293, 1e-24
    %v320 = vmax.f32 %v295, 1e-24
    %v321 = vmax.f32 %v297, 1e-24
    %v322 = vmax.f32 %v299, 1e-24
    %v323 = vmax.f32 %v301, 1e-24
    %v324 = vmax.f32 %v303, 1e-24
    %v325 = vmax.f32 %v305, 1e-24
    %v326 = vmax.f32 %v307, 1e-24
    %v327 = vmax.f32 %v309, 1e-24
    %v328 = vmax.f32 %v311, 1e-24
    %v329 = vmax.f32 %v313, 1e-24
    %v330 = vrsqrt.pop %v314
    %v331 = vrsqrt.pop %v315
    %v332 = vrsqrt.pop %v316
    %v333 = vrsqrt.pop %v317
    %v334 = vrsqrt.pop %v318
    %v335 = vrsqrt.pop %v319
    %v336 = vrsqrt.pop %v320
    %v337 = vrsqrt.pop %v321
    %v338 = vrsqrt.pop %v322
    %v339 = vrsqrt.pop %v323
    %v340 = vrsqrt.pop %v324
    %v341 = vrsqrt.pop %v325
    %v342 = vrsqrt.pop %v326
    %v343 = vrsqrt.pop %v327
    %v344 = vrsqrt.pop %v328
    %v345 = vrsqrt.pop %v329
    %v346 = vmul.f32 %v204, %v330
    %v347 = vmul.f32 %v207, %v331
    %v348 = vmul.f32 %v212, %v332
    %v349 = vmul.f32 %v215, %v333
    %v350 = vmul.f32 %v220, %v334
    %v351 = vmul.f32 %v223, %v335
    %v352 = vmul.f32 %v228, %v336
    %v353 = vmul.f32 %v231, %v337
    %v354 = vmul.f32 %v236, %v338
    %v355 = vmul.f32 %v239, %v339
    %v356 = vmul.f32 %v244, %v340
    %v357 = vmul.f32 %v247, %v341
    %v358 = vmul.f32 %v252, %v342
    %v359 = vmul.f32 %v255, %v343
    %v360 = vmul.f32 %v260, %v344
    %v361 = vmul.f32 %v263, %v345
    %v362 = vpack.c.bf16 %v347, %v346
    %v363 = vpack.c.bf16 %v349, %v348
    %v364 = vpack.c.bf16 %v351, %v350
    %v365 = vpack.c.bf16 %v353, %v352
    %v366 = vpack.c.bf16 %v355, %v354
    %v367 = vpack.c.bf16 %v357, %v356
    %v368 = vpack.c.bf16 %v359, %v358
    %v369 = vpack.c.bf16 %v361, %v360
    %v378 = vunpack.c.l.b16 %v362
    %v379 = vunpack.c.h.b16 %v362
    %v380 = vunpack.c.l.b16 %v363
    %v381 = vunpack.c.h.b16 %v363
    %v382 = vunpack.c.l.b16 %v364
    %v383 = vunpack.c.h.b16 %v364
    %v384 = vunpack.c.l.b16 %v365
    %v385 = vunpack.c.h.b16 %v365
    %v386 = vunpack.c.l.b16 %v366
    %v387 = vunpack.c.h.b16 %v366
    %v388 = vunpack.c.l.b16 %v367
    %v389 = vunpack.c.h.b16 %v367
    %v390 = vunpack.c.l.b16 %v368
    %v391 = vunpack.c.h.b16 %v368
    %v392 = vunpack.c.l.b16 %v369
    %v393 = vunpack.c.h.b16 %v369
    %v394 = vpack.c.b16 %v378, %v378
    %v395 = vpack.c.b16 %v379, %v379
    %v396 = vpack.c.b16 %v380, %v380
    %v397 = vpack.c.b16 %v381, %v381
    %v398 = vpack.c.b16 %v382, %v382
    %v399 = vpack.c.b16 %v383, %v383
    %v400 = vpack.c.b16 %v384, %v384
    %v401 = vpack.c.b16 %v385, %v385
    %v402 = vpack.c.b16 %v386, %v386
    %v403 = vpack.c.b16 %v387, %v387
    %v404 = vpack.c.b16 %v388, %v388
    %v405 = vpack.c.b16 %v389, %v389
    %v406 = vpack.c.b16 %v390, %v390
    %v407 = vpack.c.b16 %v391, %v391
    %v408 = vpack.c.b16 %v392, %v392
    %v409 = vpack.c.b16 %v393, %v393
    %426 = vst [vmem:[#allocation7] sm:$0xf] %v394
    %427 = vst [vmem:[#allocation7 + $0x4] sm:$0xf] %v395
    %428 = vst [vmem:[#allocation7 + $0x8] sm:$0xf] %v396
    %429 = vst [vmem:[#allocation7 + $0xc] sm:$0xf] %v397
    %430 = vst [vmem:[#allocation7 + $0x10] sm:$0xf] %v398
    %431 = vst [vmem:[#allocation7 + $0x14] sm:$0xf] %v399
    %432 = vst [vmem:[#allocation7 + $0x18] sm:$0xf] %v400
    %433 = vst [vmem:[#allocation7 + $0x1c] sm:$0xf] %v401
    %434 = vst [vmem:[#allocation7 + $0x20] sm:$0xf] %v402
    %435 = vst [vmem:[#allocation7 + $0x24] sm:$0xf] %v403
    %436 = vst [vmem:[#allocation7 + $0x28] sm:$0xf] %v404
    %437 = vst [vmem:[#allocation7 + $0x2c] sm:$0xf] %v405
    %438 = vst [vmem:[#allocation7 + $0x30] sm:$0xf] %v406
    %439 = vst [vmem:[#allocation7 + $0x34] sm:$0xf] %v407
    %440 = vst [vmem:[#allocation7 + $0x38] sm:$0xf] %v408
    %441 = vst [vmem:[#allocation7 + $0x3c] sm:$0xf] %v409
    // Predicated region
    $region18: #{tpu_custom_call.1} parent=1 // pred_check
      _
    $region19: #{tpu_custom_call.1} parent=1 // pred_check_branch
      %443 = sbr.rel (0) target = $region21
    $region20: #{tpu_custom_call.1} parent=1 // pred_region
      %s445 = ssub.s32 1024, 1024
      %446 = vsyncadd [#allocation4], %s445
      %s447 = sshll.u32 [#allocation7], 4
      %s448 = int_to_ptr.vmem [resolvable:$true] %s447
      %453 = dma.vmem_to_hbm [thread:$0]  %s448, 1024, %s2, [#allocation4], 64, 64, 4
    $region21: #{tpu_custom_call.1} parent=1 // pred_fallthru
      _
    // Predicated region
    $region22: #{tpu_custom_call.1} parent=1 // pred_check
      _
    $region23: #{tpu_custom_call.1} parent=1 // pred_check_branch
      %455 = sbr.rel (0) target = $region25
    $region24: #{tpu_custom_call.1} parent=1 // pred_region
      %456 = dma.done [#allocation4], 1024
    $region25: #{tpu_custom_call.1} parent=1 // pred_fallthru
      _
    %457 = vsyncpa [#allocation3], 1
    %458 = vsyncpa [#allocation6], 1
    %459 = vsyncpa [#allocation4], 1

</llo_original>
